<compile_context>
chip_gen: v5e
topology: v5e:2x2
jax: 0.10.0
libtpu: 0.0.40
codegen_flags: <defaults>
</compile_context>

<pallas_src>
import jax
import jax.numpy as jnp
from jax.experimental import pallas as pl
from jax.experimental.pallas import tpu as pltpu


def _silu_kernel(x_ref, o_ref):
    x = x_ref[...].astype(jnp.float32)
    # Numerically-stable sigmoid: exp(-|x|) never overflows; -inf -> 0, +inf -> 1.
    z = jnp.exp(-jnp.abs(x))                      # EUP slot, effectively free
    sig = jnp.where(x >= 0, 1.0 / (1.0 + z), z / (1.0 + z))
    o_ref[...] = (x * sig).astype(o_ref.dtype)


def glu(x: jax.Array, *, target_block_bytes: int = 4 * 1024 * 1024) -> jax.Array:
    """Elementwise x * sigmoid(x) for any shape / float dtype."""
    orig_shape = x.shape
    dtype = x.dtype
    itemsize = jnp.dtype(dtype).itemsize
    # Sublane packing: 8 rows/vreg for 32-bit, 16 for bf16/f16, 32 for 8-bit.
    sublane = max(8, 32 // max(itemsize, 1))

    n = x.size
    # Widest lane count that divides n exactly (no copy, unmasked wide stores);
    # fall back to a padded 128-lane layout for ragged sizes.
    lanes, n_pad = 128, (-n) % (sublane * 128)
    for c in (2048, 1024, 512, 256, 128):
        if n % (sublane * c) == 0:
            lanes, n_pad = c, 0
            break

    if n_pad == 0:
        x2d = x.reshape(n // lanes, lanes)        # pure reshape, no extra HBM pass
    else:
        # TODO(synk): ragged sizes take one padding copy (rare for NCHW activations).
        x2d = jnp.pad(x.reshape(-1), (0, n_pad)).reshape(-1, lanes)
    rows = x2d.shape[0]                           # always a multiple of `sublane`

    # ---- row-tile selection (target ~4 MiB per block) ----------------------
    row_bytes = lanes * itemsize
    tile = max(sublane, (target_block_bytes // row_bytes) // sublane * sublane)
    tile = min(tile, rows)
    tile = max(sublane, (tile // sublane) * sublane)
    # Keep at least 2 grid steps when possible so "parallel" can use both
    # TensorCores on v7x.
    if rows > sublane and pl.cdiv(rows, tile) < 2:
        tile = max(sublane, pl.cdiv(pl.cdiv(rows, 2), sublane) * sublane)

    grid = (pl.cdiv(rows, tile),)

    out2d = pl.pallas_call(
        _silu_kernel,
        out_shape=jax.ShapeDtypeStruct((rows, lanes), dtype),
        grid_spec=pltpu.PrefetchScalarGridSpec(
            num_scalar_prefetch=0,
            grid=grid,
            in_specs=[pl.BlockSpec((tile, lanes), lambda i: (i, 0))],
            out_specs=pl.BlockSpec((tile, lanes), lambda i: (i, 0)),
        ),
        compiler_params=pltpu.CompilerParams(
            dimension_semantics=("parallel",),
            # 4 MiB blocks * 2 arrays * 2 (double buffer) = 16 MiB; raise the
            # scoped-VMEM cap to 32 MiB so v5e (default 16 MiB) has headroom.
            vmem_limit_bytes=32 * 1024 * 1024,
        ),
    )(x2d)

    out_flat = out2d.reshape(-1)
    if n_pad:
        out_flat = out_flat[:n]
    return out_flat.reshape(orig_shape)


if __name__ == "__main__":
    key = jax.random.PRNGKey(0)

    # Small NCHW-like input consistent with how GLU is used in the model.
    x = jax.random.normal(key, (2, 4, 16, 16), dtype=jnp.float32)
    out = jax.block_until_ready(glu(x))
    ref = x * jax.nn.sigmoid(x)
    assert out.shape == x.shape and out.dtype == x.dtype
    assert jnp.max(jnp.abs(out - ref)) < 1e-5

    # Also exercise the ragged (padded) path once with a tiny odd-sized input.
    x2 = jax.random.normal(jax.random.PRNGKey(0), (2, 3, 5, 7), dtype=jnp.float32)
    out2 = jax.block_until_ready(glu(x2))
    ref2 = x2 * jax.nn.sigmoid(x2)
    assert out2.shape == x2.shape
    assert jnp.max(jnp.abs(out2 - ref2)) < 1e-5

    print("KERNEL_OK")
</pallas_src>

<mosaic_0001>
module attributes {stable_mosaic.version = 11 : i64} {
  func.func @_silu_kernel(%arg0: i32, %arg1: memref<8x256xf32, #tpu.memory_space<vmem>>, %arg2: memref<8x256xf32, #tpu.memory_space<vmem>>) attributes {dimension_semantics = [#tpu.dimension_semantics<parallel>], iteration_bounds = array<i64: 1>, scalar_prefetch = 0 : i64, scratch_operands = 0 : i64, tpu.core_type = #tpu.core_type<tc>, window_params = [{transform_indices = @transform_0, window_bounds = array<i64: 8, 256>}, {transform_indices = @transform_1, window_bounds = array<i64: 8, 256>}]} {
    %c0 = arith.constant 0 : index
    %c0_0 = arith.constant 0 : index
    %0 = vector.load %arg1[%c0, %c0_0] : memref<8x256xf32, #tpu.memory_space<vmem>>, vector<8x256xf32>
    %1 = math.absf %0 : vector<8x256xf32>
    %cst = arith.constant 0.000000e+00 : f32
    %2 = vector.broadcast %cst : f32 to vector<8x256xf32>
    %3 = arith.subf %2, %1 : vector<8x256xf32>
    %4 = math.exp %3 : vector<8x256xf32>
    %cst_1 = arith.constant 0.000000e+00 : f32
    %5 = vector.broadcast %cst_1 : f32 to vector<8x256xf32>
    %6 = arith.cmpf oge, %0, %5 : vector<8x256xf32>
    %cst_2 = arith.constant 1.000000e+00 : f32
    %7 = vector.broadcast %cst_2 : f32 to vector<8x256xf32>
    %8 = arith.addf %7, %4 : vector<8x256xf32>
    %cst_3 = arith.constant 1.000000e+00 : f32
    %9 = vector.broadcast %cst_3 : f32 to vector<8x256xf32>
    %10 = arith.divf %9, %8 : vector<8x256xf32>
    %cst_4 = arith.constant 1.000000e+00 : f32
    %11 = vector.broadcast %cst_4 : f32 to vector<8x256xf32>
    %12 = arith.addf %11, %4 : vector<8x256xf32>
    %13 = arith.divf %4, %12 : vector<8x256xf32>
    %14 = arith.select %6, %10, %13 : vector<8x256xi1>, vector<8x256xf32>
    %15 = arith.mulf %0, %14 : vector<8x256xf32>
    %c0_5 = arith.constant 0 : index
    %c0_6 = arith.constant 0 : index
    %16 = vector.load %arg2[%c0_5, %c0_6] : memref<8x256xf32, #tpu.memory_space<vmem>>, vector<8x256xf32>
    tpu.vector_store %arg2[%c0_5, %c0_6], %15 {strides = array<i32>} : memref<8x256xf32, #tpu.memory_space<vmem>>, vector<8x256xf32>,
    return
  }
  func.func @transform_0(%arg0: i32) -> (i32, i32) {
    %c0_i32 = arith.constant 0 : i32
    %c0_i32_0 = arith.constant 0 : i32
    return %arg0, %c0_i32 : i32, i32
  }
  func.func @transform_1(%arg0: i32) -> (i32, i32) {
    %c0_i32 = arith.constant 0 : i32
    %c0_i32_0 = arith.constant 0 : i32
    return %arg0, %c0_i32 : i32, i32
  }
}

</mosaic_0001>

<llo_original>
// kernel: tpu_custom_call.1
$region0: #{tpu_custom_call.1}
  #allocation0 [shape = 'u32[]', space=smem, size = 0x4, offset = 0x4, fixed_abs, tag = 'smem constant byte address 0x4 - core index']
  #allocation1 [shape = 'u32[72,128]{1,0:T(1,128)}', space=vmem, size = 0x9000, scoped, tag = 'internal scratch']
  %s0 = inlined_call_operand.hbm [shape: f32[8,256], index: 0, kind: input, shape index: {}]
  %s1 = inlined_call_operand.hbm [shape: f32[8,256], index: 1, kind: output, shape index: {}]
  %s2 = sld [smem:[#allocation0]]
  $region18: #{tpu_custom_call.1} parent=0
    _
  %s4 = ssub.s32 1, %s2
  %s5 = scalar_select 0, %s4, %s2
  $region1: #{tpu_custom_call.1} parent=0
    #allocation2 [shape = 'u8[8192]{0}', space=vmem, size = 0x2000, scoped, tag = 'input window, operand 0, single buffered']
    #allocation3 [shape = 's32[1]{0}', space=sflag, size = 0x4, scoped, tag = 'scoped memory for tpu_custom_call.1']
    #allocation4 [shape = 's32[1]{0}', space=sflag, size = 0x4, scoped, tag = 'scoped memory for tpu_custom_call.1']
    #allocation5 [shape = 'u8[8192]{0}', space=vmem, size = 0x2000, scoped, tag = 'output window, operand 0, single buffered']
    %6 = vsyncpa [#allocation3], 0
    %7 = vsyncpa [#allocation4], 0
    // Predicated region
    $region2: #{tpu_custom_call.1} parent=1 // pred_check
      _
    $region3: #{tpu_custom_call.1} parent=1 // pred_check_branch
      %9 = sbr.rel (0) target = $region5
    $region4: #{tpu_custom_call.1} parent=1 // pred_region
      %11 = vsyncadd [#allocation3], 0
      %s13 = sshll.u32 %s0, 4
      %s14 = int_to_ptr.hbm [resolvable:$true] %s13
      %s15 = sshll.u32 [#allocation2], 4
      %s16 = int_to_ptr.vmem [resolvable:$true] %s15
      %18 = dma.hbm_to_vmem [thread:$0]  %s14, 256, %s16, [#allocation3]
    $region5: #{tpu_custom_call.1} parent=1 // pred_fallthru
      _
    // Predicated region
    $region6: #{tpu_custom_call.1} parent=1 // pred_check
      _
    $region7: #{tpu_custom_call.1} parent=1 // pred_check_branch
      %20 = sbr.rel (0) target = $region9
    $region8: #{tpu_custom_call.1} parent=1 // pred_region
      %22 = dma.done [#allocation3], 256
    $region9: #{tpu_custom_call.1} parent=1 // pred_fallthru
      _
    %v23 = vld [vmem:[#allocation2] sm:$0xff]
    %v24 = vld [vmem:[#allocation2 + $0x8] sm:$0xff]
    %v25 = vand.u32 2147483647, %v23
    %v26 = vand.u32 2147483647, %v24
    %v27 = vsub.f32 0.0, %v25
    %v28 = vsub.f32 0.0, %v26
    %v29 = vmul.f32 %v27, 1.442695
    %v30 = vpow.pop %v29
    %v31 = vmul.f32 %v28, 1.442695
    %v32 = vpow.pop %v31
    %vm33 = vcmp.ge.f32.partialorder %v23, 0.0
    %vm34 = vcmp.ge.f32.partialorder %v24, 0.0
    %v35 = vadd.f32 %v30, 1.0
    %v36 = vadd.f32 %v32, 1.0
    %v37 = vrcp.pop %v35
    %v38 = vmul.f32 %v35, %v37
    %v39 = vsub.f32 1.0, %v38
    %v40 = vmul.f32 %v37, %v39
    %v41 = vadd.f32 %v37, %v40
    %vm42 = vweird.f32 %v35
    %vm43 = vweird.f32 %v37
    %vm44 = vmor %vm42, %vm43
    %v45 = vsel %vm44, %v37, %v41
    %v46 = vand.u32 2147483647, %v35
    %vm47 = vcmp.eq.f32.partialorder %v46, 8.507059e+37
    %v48 = vand.u32 %v35, 2147483648
    %v49 = vor.u32 1.1754944e-38, %v48
    %v50 = vsel %vm47, %v49, %v45
    %v51 = vmul.f32 1.0, %v50
    %v52 = vrcp.pop %v36
    %v53 = vmul.f32 %v36, %v52
    %v54 = vsub.f32 1.0, %v53
    %v55 = vmul.f32 %v52, %v54
    %v56 = vadd.f32 %v52, %v55
    %vm57 = vweird.f32 %v36
    %vm58 = vweird.f32 %v52
    %vm59 = vmor %vm57, %vm58
    %v60 = vsel %vm59, %v52, %v56
    %v61 = vand.u32 2147483647, %v36
    %vm62 = vcmp.eq.f32.partialorder %v61, 8.507059e+37
    %v63 = vand.u32 %v36, 2147483648
    %v64 = vor.u32 1.1754944e-38, %v63
    %v65 = vsel %vm62, %v64, %v60
    %v66 = vmul.f32 1.0, %v65
    %v67 = vmul.f32 %v30, %v50
    %v68 = vmul.f32 %v32, %v65
    %v69 = vsel %vm33, %v51, %v67
    %v70 = vsel %vm34, %v66, %v68
    %v71 = vmul.f32 %v23, %v69
    %v72 = vmul.f32 %v24, %v70
    %73 = vst [vmem:[#allocation5] sm:$0xff] %v71
    %74 = vst [vmem:[#allocation5 + $0x8] sm:$0xff] %v72
    // Predicated region
    $region10: #{tpu_custom_call.1} parent=1 // pred_check
      _
    $region11: #{tpu_custom_call.1} parent=1 // pred_check_branch
      %76 = sbr.rel (0) target = $region13
    $region12: #{tpu_custom_call.1} parent=1 // pred_region
      %78 = vsyncadd [#allocation4], 0
      %s80 = sshll.u32 [#allocation5], 4
      %s81 = int_to_ptr.vmem [resolvable:$true] %s80
      %s82 = sshll.u32 %s1, 4
      %s83 = int_to_ptr.hbm [resolvable:$true] %s82
      %85 = dma.vmem_to_hbm [thread:$0]  %s81, 256, %s83, [#allocation4]
    $region13: #{tpu_custom_call.1} parent=1 // pred_fallthru
      _
    // Predicated region
    $region14: #{tpu_custom_call.1} parent=1 // pred_check
      _
    $region15: #{tpu_custom_call.1} parent=1 // pred_check_branch
      %87 = sbr.rel (0) target = $region17
    $region16: #{tpu_custom_call.1} parent=1 // pred_region
      %89 = dma.done [#allocation4], 256
    $region17: #{tpu_custom_call.1} parent=1 // pred_fallthru
      _
    %90 = vsyncpa [#allocation3], 1
    %91 = vsyncpa [#allocation4], 1

</llo_original>
